<compile_context>
chip_gen: v6e
topology: v6e:2x2x1
jax: 0.10.0
libtpu: 0.0.40
codegen_flags: <defaults>
</compile_context>

<pallas_src>
import jax
import jax.numpy as jnp
from jax import lax
from jax.experimental import pallas as pl
from jax.experimental.pallas import tpu as pltpu


# --------------------------------------------------------------------------
# Tile selection / budget guards
# --------------------------------------------------------------------------
def _pick_tn(n_dim):
    """Generation-dependent channel-tile width."""
    kind = ""
    try:
        kind = jax.devices()[0].device_kind.lower()
    except Exception:  # pragma: no cover - defensive
        pass
    if "v5" in kind:
        pref = 128                      # v5e MXU is 4x128x128
    else:
        pref = 256                      # v6e / v7x MXU is 2x256x256
    if "v7" in kind and pref > 128 and n_dim // pref < 2:
        pref = 128                      # keep >=2 tiles so both v7x TCs work
    tn = min(pref, n_dim)
    while tn > 128 and n_dim % tn != 0:
        tn //= 2
    if n_dim % tn != 0:
        tn = n_dim                      # full-channel block is always legal
    return tn


def _check_vmem_budget(m, k_dim, tn):
    # x (bf16, resident) + double-buffered w tile (bf16) + f32 intermediates
    # + bf16/f32 output tile.  Conservative vs. the 32 MiB default scoped
    # limit (v7x has only 64 MiB physical per TC).
    need = m * k_dim * 2 + 2 * (k_dim * tn * 2) + 2 * (m * tn * 4)
    assert need < (24 << 20), (
        "OutLayer kernel keeps all B*node_num rows resident per channel tile "
        f"({need} bytes needed); BN batch stats require it. For larger M use "
        "a two-pass BatchNorm (stats kernel + normalize kernel).")
    # TODO(synk): two-pass / Welford BN fallback for very large B*node_num.


# --------------------------------------------------------------------------
# Hidden stage: Linear (no bias; it cancels under train-mode BN) + BN + ReLU
# grid = (n_channel_tiles,)  -- K fully resident, no reduction loop.
# --------------------------------------------------------------------------
def _linear_bn_relu_kernel(x_ref, w_ref, gb_ref, o_ref):
    # One grid step owns the full contraction (K) and ALL rows for its channel
    # tile, so per-channel batch stats are exact with no cross-tile reduction.
    # (Do NOT tile the row axis M: stats would silently become per-tile.)
    h = jnp.dot(x_ref[...], w_ref[...], preferred_element_type=jnp.float32)
    inv_m = 1.0 / h.shape[0]
    mu = jnp.sum(h, axis=0, keepdims=True) * inv_m          # (1, TN)
    ex2 = jnp.sum(h * h, axis=0, keepdims=True) * inv_m
    var = jnp.maximum(ex2 - mu * mu, 0.0)                   # biased var
    y = (h - mu) * lax.rsqrt(var + 1e-5) * gb_ref[0:1, :] + gb_ref[1:2, :]
    o_ref[...] = jnp.maximum(y, 0.0).astype(o_ref.dtype)


def linear_bn_relu(x, w, gamma, beta):
    """x: (M, K), w: (K, N) (torch weight pre-transposed) -> (M, N) bf16."""
    m, k_dim = x.shape
    _, n_dim = w.shape
    tn = _pick_tn(n_dim)
    _check_vmem_budget(m, k_dim, tn)

    gb = jnp.stack([gamma, beta], axis=0).astype(jnp.float32)   # (2, N)
    x16 = x.astype(jnp.bfloat16)
    w16 = w.astype(jnp.bfloat16)

    return pl.pallas_call(
        _linear_bn_relu_kernel,
        out_shape=jax.ShapeDtypeStruct((m, n_dim), jnp.bfloat16),
        grid=(n_dim // tn,),
        in_specs=[
            pl.BlockSpec((m, k_dim), lambda j: (0, 0)),   # x resident across j
            pl.BlockSpec((k_dim, tn), lambda j: (0, j)),  # weight tile
            pl.BlockSpec((2, tn), lambda j: (0, j)),      # gamma/beta packed
        ],
        out_specs=pl.BlockSpec((m, tn), lambda j: (0, j)),
        compiler_params=pltpu.CompilerParams(
            dimension_semantics=("parallel",)),
    )(x16, w16, gb)


# --------------------------------------------------------------------------
# Last hidden stage fused with the final Linear(inter -> 1).
# Each channel tile writes its (M, 1) partial of the final output.
# --------------------------------------------------------------------------
def _fused_last_stage_kernel(x_ref, w_ref, gb_ref, wf_ref, p_ref):
    h = jnp.dot(x_ref[...], w_ref[...], preferred_element_type=jnp.float32)
    inv_m = 1.0 / h.shape[0]
    mu = jnp.sum(h, axis=0, keepdims=True) * inv_m
    ex2 = jnp.sum(h * h, axis=0, keepdims=True) * inv_m
    var = jnp.maximum(ex2 - mu * mu, 0.0)
    y = (h - mu) * lax.rsqrt(var + 1e-5) * gb_ref[0:1, :] + gb_ref[1:2, :]
    a = jnp.maximum(y, 0.0)
    # Partial of the final Linear for this channel tile (f32, tiny).
    p_ref[0] = jnp.dot(a, wf_ref[...], preferred_element_type=jnp.float32)


def fused_last_stage(x, w, gamma, beta, w_final, b_final):
    """Last hidden stage + Linear(inter->1). Returns (M, 1) f32."""
    m, k_dim = x.shape
    _, n_dim = w.shape
    tn = _pick_tn(n_dim)
    n_tiles = n_dim // tn
    _check_vmem_budget(m, k_dim, tn)

    gb = jnp.stack([gamma, beta], axis=0).astype(jnp.float32)
    x16 = x.astype(jnp.bfloat16)
    w16 = w.astype(jnp.bfloat16)
    wf = w_final.astype(jnp.float32)                      # (N, 1)

    partials = pl.pallas_call(
        _fused_last_stage_kernel,
        out_shape=jax.ShapeDtypeStruct((n_tiles, m, 1), jnp.float32),
        grid=(n_tiles,),
        in_specs=[
            pl.BlockSpec((m, k_dim), lambda j: (0, 0)),
            pl.BlockSpec((k_dim, tn), lambda j: (0, j)),
            pl.BlockSpec((2, tn), lambda j: (0, j)),
            pl.BlockSpec((tn, 1), lambda j: (j, 0)),
        ],
        out_specs=pl.BlockSpec((1, m, 1), lambda j: (j, 0, 0)),
        compiler_params=pltpu.CompilerParams(
            dimension_semantics=("parallel",)),
    )(x16, w16, gb, wf)

    return jnp.sum(partials, axis=0) + b_final.reshape(1, 1).astype(jnp.float32)


# --------------------------------------------------------------------------
# Standalone final Linear (only used when layer_num == 1).
# Single grid step, direct write, bias added in the wrapper.
# --------------------------------------------------------------------------
def _final_linear_kernel(h_ref, w_ref, o_ref):
    o_ref[...] = jnp.dot(h_ref[...], w_ref[...],
                         preferred_element_type=jnp.float32)


def final_linear(h, w, bias):
    m, _ = h.shape
    out = pl.pallas_call(
        _final_linear_kernel,
        out_shape=jax.ShapeDtypeStruct((m, 1), jnp.float32),
    )(h.astype(jnp.float32), w.astype(jnp.float32))
    return out + bias.reshape(1, 1).astype(jnp.float32)


# --------------------------------------------------------------------------
# OutLayer forward
# --------------------------------------------------------------------------
def out_layer_forward(x, params):
    """x: (B, node_num, in_num).

    Hidden stage dict: {"w": (K, inter), "b": (inter,), "gamma": (inter,),
                        "beta": (inter,)}   (b is unused in the kernel: it
                        cancels exactly under train-mode BatchNorm)
    Final stage dict:  {"w": (K, 1), "b": (1,)}
    """
    b, n_nodes, _ = x.shape
    h = x.reshape(b * n_nodes, -1).astype(jnp.float32)
    hidden, final = params[:-1], params[-1]

    if not hidden:                       # layer_num == 1
        out = final_linear(h, final["w"], final["b"])
        return out.reshape(b, n_nodes, 1)

    for p in hidden[:-1]:                # intermediate hidden stages
        h = linear_bn_relu(h, p["w"], p["gamma"], p["beta"])
    p = hidden[-1]                       # last hidden stage + final linear
    out = fused_last_stage(h, p["w"], p["gamma"], p["beta"],
                           final["w"], final["b"])
    return out.reshape(b, n_nodes, 1)


def out_layer_reference(x, params):
    """Pure-JAX f32 reference with the PyTorch semantics (incl. Linear bias)."""
    b, n_nodes, _ = x.shape
    h = x.reshape(b * n_nodes, -1).astype(jnp.float32)
    for p in params[:-1]:
        h = h @ p["w"] + p["b"]
        mu = jnp.mean(h, axis=0, keepdims=True)
        var = jnp.mean((h - mu) ** 2, axis=0, keepdims=True)
        h = (h - mu) * lax.rsqrt(var + 1e-5) * p["gamma"] + p["beta"]
        h = jnp.maximum(h, 0.0)
    p = params[-1]
    out = h @ p["w"] + p["b"]
    return out.reshape(b, n_nodes, 1)


if __name__ == "__main__":
    key = jax.random.PRNGKey(0)

    def make_params(key, in_num, inter, layer_num):
        params = []
        kin = in_num
        for _ in range(layer_num - 1):
            key, k1, k2, k3, k4 = jax.random.split(key, 5)
            params.append({
                "w": 0.05 * jax.random.normal(k1, (kin, inter), jnp.float32),
                "b": 0.1 * jax.random.normal(k2, (inter,), jnp.float32),
                "gamma": 1.0 + 0.1 * jax.random.normal(k3, (inter,),
                                                       jnp.float32),
                "beta": 0.05 * jax.random.normal(k4, (inter,), jnp.float32),
            })
            kin = inter
        key, k1, k2 = jax.random.split(key, 3)
        params.append({
            "w": 0.1 * jax.random.normal(k1, (kin, 1), jnp.float32),
            "b": 0.1 * jax.random.normal(k2, (1,), jnp.float32),
        })
        return params

    # Small but tile-exercising shapes: M = B*node_num = 64 rows,
    # K = 256, inter = 256 (1-2 lane-dense channel tiles depending on chip).
    B, NODE, IN_NUM, INTER = 4, 16, 256, 256

    # layer_num=1 -> standalone final-linear kernel (tight f32 tolerance);
    # layer_num=2 -> fused Linear+BN+ReLU+final-Linear kernel;
    # layer_num=3 -> additionally the standalone hidden-stage kernel.
    # Looser tolerances for layer_num>=2 cover the bf16 MXU feed.
    for layer_num, tol in ((1, 1e-3), (2, 3e-2), (3, 5e-2)):
        key, kx, kp = jax.random.split(key, 3)
        x = jax.random.normal(kx, (B, NODE, IN_NUM), jnp.float32)
        params = make_params(kp, IN_NUM, INTER, layer_num)

        out = jax.block_until_ready(out_layer_forward(x, params))
        assert out.shape == (B, NODE, 1)
        assert bool(jnp.all(jnp.isfinite(out)))

        ref = jax.block_until_ready(out_layer_reference(x, params))
        max_err = float(jnp.max(jnp.abs(out - ref)))
        assert max_err < tol, (
            f"layer_num={layer_num}: mismatch vs reference: {max_err}")

    print("KERNEL_OK")
</pallas_src>

<mosaic_0001>
module attributes {stable_mosaic.version = 11 : i64} {
  func.func @_final_linear_kernel(%arg0: memref<64x256xf32, #tpu.memory_space<vmem>>, %arg1: memref<256x1xf32, #tpu.memory_space<vmem>>, %arg2: memref<64x1xf32, #tpu.memory_space<vmem>>) attributes {dimension_semantics = [], scalar_prefetch = 0 : i64, scratch_operands = 0 : i64, tpu.core_type = #tpu.core_type<tc>} {
    %c0 = arith.constant 0 : index
    %c0_0 = arith.constant 0 : index
    %0 = vector.load %arg0[%c0, %c0_0] : memref<64x256xf32, #tpu.memory_space<vmem>>, vector<64x256xf32>
    %c0_1 = arith.constant 0 : index
    %c0_2 = arith.constant 0 : index
    %1 = vector.load %arg1[%c0_1, %c0_2] : memref<256x1xf32, #tpu.memory_space<vmem>>, vector<256x1xf32>
    %cst = arith.constant dense<0.000000e+00> : vector<64x1xf32>
    %2 = tpu.matmul %0, %1, %cst {dimension_numbers = #tpu.dot_dimension_numbers<[1], [0], [0], [1], [0, 0, 1, 1], [], []>} : vector<64x256xf32>, vector<256x1xf32>, vector<64x1xf32> -> vector<64x1xf32>
    %c0_3 = arith.constant 0 : index
    %c0_4 = arith.constant 0 : index
    %3 = vector.load %arg2[%c0_3, %c0_4] : memref<64x1xf32, #tpu.memory_space<vmem>>, vector<64x1xf32>
    tpu.vector_store %arg2[%c0_3, %c0_4], %2 {strides = array<i32>} : memref<64x1xf32, #tpu.memory_space<vmem>>, vector<64x1xf32>,
    return
  }
}

</mosaic_0001>

<llo_original>
// kernel: tpu_custom_call.1
$region0: #{tpu_custom_call.1}
  #allocation0 [shape = 'u32[]', space=smem, size = 0x4, offset = 0x4, fixed_abs, tag = 'smem constant byte address 0x4 - core index']
  #allocation1 [shape = 'u32[144,128]{1,0:T(1,128)}', space=vmem, size = 0x12000, scoped, tag = 'internal scratch']
  %s0 = inlined_call_operand.vmem [shape: f32[64,256], index: 0, kind: input, shape index: {}]
  %s1 = inlined_call_operand.vmem [shape: f32[256,1], index: 1, kind: input, shape index: {}]
  %s2 = inlined_call_operand.vmem [shape: f32[64,1], index: 2, kind: output, shape index: {}]
  %s3 = sld [smem:[#allocation0]]
  $region18: #{tpu_custom_call.1} parent=0
    _
  %s5 = ssub.s32 1, %s3
  %s6 = scalar_select 0, %s5, %s3
  // Predicated region
  $region2: #{tpu_custom_call.1} parent=0 // pred_check
    _
  $region3: #{tpu_custom_call.1} parent=0 // pred_check_branch
    %8 = sbr.rel (0) target = $region5
  $region4: #{tpu_custom_call.1} parent=0 // pred_region
    _
  $region5: #{tpu_custom_call.1} parent=0 // pred_fallthru
    _
  // Predicated region
  $region6: #{tpu_custom_call.1} parent=0 // pred_check
    _
  $region7: #{tpu_custom_call.1} parent=0 // pred_check_branch
    %10 = sbr.rel (0) target = $region9
  $region8: #{tpu_custom_call.1} parent=0 // pred_region
    _
  $region9: #{tpu_custom_call.1} parent=0 // pred_fallthru
    _
  %v11 = vld [vmem:[%s0] sm:$0xff]
  %v12 = vld [vmem:[%s0 + $0x8] sm:$0xff]
  %v13 = vld [vmem:[%s0 + $0x10] sm:$0xff]
  %v14 = vld [vmem:[%s0 + $0x18] sm:$0xff]
  %v15 = vld [vmem:[%s0 + $0x20] sm:$0xff]
  %v16 = vld [vmem:[%s0 + $0x28] sm:$0xff]
  %v17 = vld [vmem:[%s0 + $0x30] sm:$0xff]
  %v18 = vld [vmem:[%s0 + $0x38] sm:$0xff]
  %v19 = vld [vmem:[%s0 + $0x40] sm:$0xff]
  %v20 = vld [vmem:[%s0 + $0x48] sm:$0xff]
  %v21 = vld [vmem:[%s0 + $0x50] sm:$0xff]
  %v22 = vld [vmem:[%s0 + $0x58] sm:$0xff]
  %v23 = vld [vmem:[%s0 + $0x60] sm:$0xff]
  %v24 = vld [vmem:[%s0 + $0x68] sm:$0xff]
  %v25 = vld [vmem:[%s0 + $0x70] sm:$0xff]
  %v26 = vld [vmem:[%s0 + $0x78] sm:$0xff]
  %v27 = vld [vmem:[%s1] sm:$0xff]
  %v28 = vld [vmem:[%s1 + $0x8] sm:$0xff]
  %v29 = vld [vmem:[%s1 + $0x10] sm:$0xff]
  %v30 = vld [vmem:[%s1 + $0x18] sm:$0xff]
  %v31 = vld [vmem:[%s1 + $0x20] sm:$0xff]
  %v32 = vld [vmem:[%s1 + $0x28] sm:$0xff]
  %v33 = vld [vmem:[%s1 + $0x30] sm:$0xff]
  %v34 = vld [vmem:[%s1 + $0x38] sm:$0xff]
  %v35 = vld [vmem:[%s1 + $0x40] sm:$0xff]
  %v36 = vld [vmem:[%s1 + $0x48] sm:$0xff]
  %v37 = vld [vmem:[%s1 + $0x50] sm:$0xff]
  %v38 = vld [vmem:[%s1 + $0x58] sm:$0xff]
  %v39 = vld [vmem:[%s1 + $0x60] sm:$0xff]
  %v40 = vld [vmem:[%s1 + $0x68] sm:$0xff]
  %v41 = vld [vmem:[%s1 + $0x70] sm:$0xff]
  %v42 = vld [vmem:[%s1 + $0x78] sm:$0xff]
  %v43 = vld [vmem:[%s1 + $0x80] sm:$0xff]
  %v44 = vld [vmem:[%s1 + $0x88] sm:$0xff]
  %v45 = vld [vmem:[%s1 + $0x90] sm:$0xff]
  %v46 = vld [vmem:[%s1 + $0x98] sm:$0xff]
  %v47 = vld [vmem:[%s1 + $0xa0] sm:$0xff]
  %v48 = vld [vmem:[%s1 + $0xa8] sm:$0xff]
  %v49 = vld [vmem:[%s1 + $0xb0] sm:$0xff]
  %v50 = vld [vmem:[%s1 + $0xb8] sm:$0xff]
  %v51 = vld [vmem:[%s1 + $0xc0] sm:$0xff]
  %v52 = vld [vmem:[%s1 + $0xc8] sm:$0xff]
  %v53 = vld [vmem:[%s1 + $0xd0] sm:$0xff]
  %v54 = vld [vmem:[%s1 + $0xd8] sm:$0xff]
  %v55 = vld [vmem:[%s1 + $0xe0] sm:$0xff]
  %v56 = vld [vmem:[%s1 + $0xe8] sm:$0xff]
  %v57 = vld [vmem:[%s1 + $0xf0] sm:$0xff]
  %v58 = vld [vmem:[%s1 + $0xf8] sm:$0xff]
  %59 = vmatprep.subr.mxu0 0.0
  %60 = vmatpush1.msra.mxu0 %v42
  %61 = vmatprep.subr.mxu0 0.0
  %62 = vmatpush1.msra.mxu0 %v41
  %63 = vmatprep.subr.mxu0 0.0
  %64 = vmatpush1.msra.mxu0 %v40
  %65 = vmatprep.subr.mxu0 0.0
  %66 = vmatpush1.msra.mxu0 %v39
  %67 = vmatprep.subr.mxu0 0.0
  %68 = vmatpush1.msra.mxu0 %v38
  %69 = vmatprep.subr.mxu0 0.0
  %70 = vmatpush1.msra.mxu0 %v37
  %71 = vmatprep.subr.mxu0 0.0
  %72 = vmatpush1.msra.mxu0 %v36
  %73 = vmatprep.subr.mxu0 0.0
  %74 = vmatpush1.msra.mxu0 %v35
  %75 = vmatprep.subr.mxu0 0.0
  %76 = vmatpush1.msra.mxu0 %v34
  %77 = vmatprep.subr.mxu0 0.0
  %78 = vmatpush1.msra.mxu0 %v33
  %79 = vmatprep.subr.mxu0 0.0
  %80 = vmatpush1.msra.mxu0 %v32
  %81 = vmatprep.subr.mxu0 0.0
  %82 = vmatpush1.msra.mxu0 %v31
  %83 = vmatprep.subr.mxu0 0.0
  %84 = vmatpush1.msra.mxu0 %v30
  %85 = vmatprep.subr.mxu0 0.0
  %86 = vmatpush1.msra.mxu0 %v29
  %87 = vmatprep.subr.mxu0 0.0
  %88 = vmatpush1.msra.mxu0 %v28
  %89 = vmatprep.subr.mxu0 0.0
  %90 = vmatpush1.msra.mxu0 %v27
  %91 = vmatprep.subr.mxu0 0.0
  %92 = vmatpush2.msra.mxu0 %v58
  %93 = vmatprep.subr.mxu0 0.0
  %94 = vmatpush2.msra.mxu0 %v57
  %95 = vmatprep.subr.mxu0 0.0
  %96 = vmatpush2.msra.mxu0 %v56
  %97 = vmatprep.subr.mxu0 0.0
  %98 = vmatpush2.msra.mxu0 %v55
  %99 = vmatprep.subr.mxu0 0.0
  %100 = vmatpush2.msra.mxu0 %v54
  %101 = vmatprep.subr.mxu0 0.0
  %102 = vmatpush2.msra.mxu0 %v53
  %103 = vmatprep.subr.mxu0 0.0
  %104 = vmatpush2.msra.mxu0 %v52
  %105 = vmatprep.subr.mxu0 0.0
  %106 = vmatpush2.msra.mxu0 %v51
  %107 = vmatprep.subr.mxu0 0.0
  %108 = vmatpush2.msra.mxu0 %v50
  %109 = vmatprep.subr.mxu0 0.0
  %110 = vmatpush2.msra.mxu0 %v49
  %111 = vmatprep.subr.mxu0 0.0
  %112 = vmatpush2.msra.mxu0 %v48
  %113 = vmatprep.subr.mxu0 0.0
  %114 = vmatpush2.msra.mxu0 %v47
  %115 = vmatprep.subr.mxu0 0.0
  %116 = vmatpush2.msra.mxu0 %v46
  %117 = vmatprep.subr.mxu0 0.0
  %118 = vmatpush2.msra.mxu0 %v45
  %119 = vmatprep.subr.mxu0 0.0
  %120 = vmatpush2.msra.mxu0 %v44
  %121 = vmatprep.subr.mxu0 0.0
  %122 = vmatpush2.msra.mxu0 %v43
  %123 = vmatprep.mubr.f32.mxu0 %v12
  %124 = vmatmul.mubr.f32.gmra.mxu0 %v11
  %v125 = vpop.f32.mrf.mxu0
  %v126 = vadd.f32 0.0, %v125
  %v127 = vpop.f32.mrf.mxu0
  %128 = vmatprep.mubr.f32.mxu0 %v14
  %129 = vmatmul.mubr.f32.gmra.mxu0 %v13
  %v130 = vpop.f32.mrf.mxu0
  %v131 = vadd.f32 0.0, %v130
  %v132 = vpop.f32.mrf.mxu0
  %133 = vmatprep.mubr.f32.mxu0 %v16
  %134 = vmatmul.mubr.f32.gmra.mxu0 %v15
  %v135 = vpop.f32.mrf.mxu0
  %v136 = vadd.f32 0.0, %v135
  %v137 = vpop.f32.mrf.mxu0
  %138 = vmatprep.mubr.f32.mxu0 %v18
  %139 = vmatmul.mubr.f32.gmra.mxu0 %v17
  %v140 = vpop.f32.mrf.mxu0
  %v141 = vadd.f32 0.0, %v140
  %v142 = vpop.f32.mrf.mxu0
  %143 = vmatprep.mubr.f32.mxu0 %v20
  %144 = vmatmul.mubr.f32.gmra.mxu0 %v19
  %v145 = vpop.f32.mrf.mxu0
  %v146 = vadd.f32 0.0, %v145
  %v147 = vpop.f32.mrf.mxu0
  %148 = vmatprep.mubr.f32.mxu0 %v22
  %149 = vmatmul.mubr.f32.gmra.mxu0 %v21
  %v150 = vpop.f32.mrf.mxu0
  %v151 = vadd.f32 0.0, %v150
  %v152 = vpop.f32.mrf.mxu0
  %153 = vmatprep.mubr.f32.mxu0 %v24
  %154 = vmatmul.mubr.f32.gmra.mxu0 %v23
  %v155 = vpop.f32.mrf.mxu0
  %v156 = vadd.f32 0.0, %v155
  %v157 = vpop.f32.mrf.mxu0
  %158 = vmatprep.mubr.f32.mxu0 %v26
  %159 = vmatmul.mubr.f32.gmra.mxu0 %v25
  %v160 = vpop.f32.mrf.mxu0
  %v161 = vadd.f32 0.0, %v160
  %v162 = vpop.f32.mrf.mxu0
  %163 = vdwg.mxu0
  %vm164 = vcmask 7168
  %165 = vst.msk [vmem:[%s2] sm:$0xff] %vm164, %v126
  %166 = vst.msk [vmem:[%s2 + $0x8] sm:$0xff] %vm164, %v131
  %167 = vst.msk [vmem:[%s2 + $0x10] sm:$0xff] %vm164, %v136
  %168 = vst.msk [vmem:[%s2 + $0x18] sm:$0xff] %vm164, %v141
  %169 = vst.msk [vmem:[%s2 + $0x20] sm:$0xff] %vm164, %v146
  %170 = vst.msk [vmem:[%s2 + $0x28] sm:$0xff] %vm164, %v151
  %171 = vst.msk [vmem:[%s2 + $0x30] sm:$0xff] %vm164, %v156
  %172 = vst.msk [vmem:[%s2 + $0x38] sm:$0xff] %vm164, %v161
  // Predicated region
  $region10: #{tpu_custom_call.1} parent=0 // pred_check
    _
  $region11: #{tpu_custom_call.1} parent=0 // pred_check_branch
    %174 = sbr.rel (0) target = $region13
  $region12: #{tpu_custom_call.1} parent=0 // pred_region
    _
  $region13: #{tpu_custom_call.1} parent=0 // pred_fallthru
    _
  // Predicated region
  $region14: #{tpu_custom_call.1} parent=0 // pred_check
    _
  $region15: #{tpu_custom_call.1} parent=0 // pred_check_branch
    %176 = sbr.rel (0) target = $region17
  $region16: #{tpu_custom_call.1} parent=0 // pred_region
    _
  $region17: #{tpu_custom_call.1} parent=0 // pred_fallthru
    _

</llo_original>
